<compile_context>
chip_gen: v5e
topology: v5e:2x2
jax: 0.10.0
libtpu: 0.0.40
codegen_flags: <defaults>
</compile_context>

<pallas_src>
import numpy as np
import jax
import jax.numpy as jnp
from jax.experimental import pallas as pl
from jax.experimental.pallas import tpu as pltpu


def fracdiff_coeffs(d: float, window: int) -> np.ndarray:
    """Coefficients of (1 - L)^d truncated at `window` terms."""
    c = np.zeros(window, dtype=np.float64)
    c[0] = 1.0
    for k in range(1, window):
        c[k] = c[k - 1] * (k - 1 - d) / k
    return c


def _round_up(x: int, m: int) -> int:
    return ((x + m - 1) // m) * m


def _sublane_multiple(dtype) -> int:
    # 8 sublanes of 32-bit; narrower dtypes pack along sublanes.
    return max(8, 32 // jnp.dtype(dtype).itemsize)


def _make_fir_kernel(coeffs, halo: int, tn: int):
    """Shifted-FMA FIR kernel: statically unrolled `window` taps on the VPU."""
    window = len(coeffs)
    cs = [float(c) for c in coeffs]

    def kernel(h_ref, x_ref, o_ref):
        j = pl.program_id(1)
        # Causal zero padding: the first lane tile has no real left halo
        # (its halo BlockSpec is clamped to block 0, so gate it to zero).
        gate = (j > 0).astype(jnp.float32)
        h = h_ref[...].astype(jnp.float32) * gate           # (TM, HALO)
        x = x_ref[...].astype(jnp.float32)                  # (TM, TN)
        x_ext = jnp.concatenate([h, x], axis=-1)            # (TM, HALO + TN)
        acc = cs[0] * x                                      # k = 0 (aligned)
        for k in range(1, window):                           # unrolled taps
            acc = acc + cs[k] * x_ext[:, halo - k:halo - k + tn]
        o_ref[...] = acc.astype(o_ref.dtype)

    return kernel


def fracdiff(x, d: float = 0.5, window: int = 10, mode: str = "same",
             tm: int = 256, tn: int = 512):
    """Fractional differentiation along the last axis (mode='same')."""
    assert mode == "same"
    assert window >= 1

    x = jnp.asarray(x)
    if not jnp.issubdtype(x.dtype, jnp.floating):
        x = x.astype(jnp.float32)            # integer inputs promote to float
    out_dtype = x.dtype                      # floating dtype is preserved

    orig_shape = x.shape
    L = int(orig_shape[-1])
    B = int(np.prod(orig_shape[:-1])) if len(orig_shape) > 1 else 1
    x2 = x.reshape(B, L)

    sub = _sublane_multiple(x.dtype)
    TM = min(_round_up(tm, sub), _round_up(B, sub))
    TN = min(tn, _round_up(L, 128))
    HALO = _round_up(max(window - 1, 1), 128)
    assert TM % sub == 0 and TN % 128 == 0
    assert HALO <= TN and TN % HALO == 0, "window too large for tile size TN"

    B_pad = _round_up(B, TM)
    L_pad = _round_up(L, TN)
    if (B_pad, L_pad) != (B, L):
        # Right/bottom zero pad only (the filter is causal, so trailing zeros
        # never contaminate the kept [0, L) outputs).  Skipped entirely when
        # the input is already tile-aligned.
        x2 = jnp.pad(x2, ((0, B_pad - B), (0, L_pad - L)))

    coeffs = fracdiff_coeffs(d, window)
    kernel = _make_fir_kernel(coeffs, HALO, TN)

    grid = (B_pad // TM, L_pad // TN)
    n_halo_blocks = TN // HALO

    xbytes = jnp.dtype(x2.dtype).itemsize
    obytes = jnp.dtype(out_dtype).itemsize
    flops = 2 * B_pad * L_pad * window
    bytes_accessed = (B_pad * L_pad * xbytes                    # current tiles
                      + B_pad * grid[1] * HALO * xbytes         # halo re-reads
                      + B_pad * L_pad * obytes)                 # output

    out = pl.pallas_call(
        kernel,
        out_shape=jax.ShapeDtypeStruct((B_pad, L_pad), out_dtype),
        grid_spec=pltpu.PrefetchScalarGridSpec(
            num_scalar_prefetch=0,
            grid=grid,
            in_specs=[
                # Narrow halo: last HALO lanes of the previous lane tile
                # (clamped to block 0 at j == 0; gated to zero in-kernel).
                pl.BlockSpec(
                    (TM, HALO),
                    lambda i, j: (i, jnp.maximum(j * n_halo_blocks - 1, 0))),
                # Current lane tile.
                pl.BlockSpec((TM, TN), lambda i, j: (i, j)),
            ],
            out_specs=pl.BlockSpec((TM, TN), lambda i, j: (i, j)),
        ),
        compiler_params=pltpu.CompilerParams(
            dimension_semantics=("parallel", "parallel"),
        ),
        cost_estimate=pl.CostEstimate(
            flops=int(flops), transcendentals=0,
            bytes_accessed=int(bytes_accessed)),
    )(x2, x2)

    return out[:B, :L].reshape(orig_shape)


def _reference_fracdiff(x_np, d, window):
    """Pure numpy reference (causal FIR with zero left padding)."""
    c = fracdiff_coeffs(d, window)
    shape = x_np.shape
    L = shape[-1]
    x2 = x_np.reshape(-1, L).astype(np.float64)
    out = np.zeros_like(x2)
    for k in range(min(window, L)):
        out[:, k:] += c[k] * x2[:, : L - k]
    return out.reshape(shape).astype(np.float32)


if __name__ == "__main__":
    d, window = 0.5, 10

    # Docstring example: arange(10).reshape(2, 5).
    x_doc = jnp.arange(10, dtype=jnp.float32).reshape(2, 5)
    out_doc = jax.block_until_ready(fracdiff(x_doc, d=d, window=window))
    expected_doc = np.array(
        [[0.0, 1.0, 1.5, 1.875, 2.1875], [5.0, 3.5, 3.375, 3.4375, 3.5547]],
        dtype=np.float32)
    np.testing.assert_allclose(np.asarray(out_doc), expected_doc, atol=1e-3)

    # Main example: (N, C, L) input.
    x = jax.random.normal(jax.random.PRNGKey(0), (2, 4, 16), dtype=jnp.float32)
    out = jax.block_until_ready(fracdiff(x, d=d, window=window))
    ref = _reference_fracdiff(np.asarray(x), d, window)
    np.testing.assert_allclose(np.asarray(out), ref, rtol=1e-5, atol=1e-5)

    # Multi-tile grid + halo + j==0 gating + wrapper padding path (small tiles).
    x2 = jax.random.normal(jax.random.PRNGKey(1), (3, 5, 300), dtype=jnp.float32)
    out2 = jax.block_until_ready(fracdiff(x2, d=d, window=window, tm=8, tn=128))
    ref2 = _reference_fracdiff(np.asarray(x2), d, window)
    np.testing.assert_allclose(np.asarray(out2), ref2, rtol=1e-4, atol=1e-4)

    # Already-aligned (no wrapper pad) path, default TN=512 with 2 lane tiles.
    x3 = jax.random.normal(jax.random.PRNGKey(2), (2, 8, 1024), dtype=jnp.float32)
    out3 = jax.block_until_ready(fracdiff(x3, d=d, window=window))
    ref3 = _reference_fracdiff(np.asarray(x3), d, window)
    np.testing.assert_allclose(np.asarray(out3), ref3, rtol=1e-4, atol=1e-4)

    # Native bf16 path: bf16 DMA, f32 accumulation, bf16 output dtype preserved.
    x4 = jax.random.normal(jax.random.PRNGKey(3), (2, 4, 256), dtype=jnp.bfloat16)
    out4 = jax.block_until_ready(fracdiff(x4, d=d, window=window))
    assert out4.dtype == jnp.bfloat16
    ref4 = _reference_fracdiff(np.asarray(x4.astype(jnp.float32)), d, window)
    np.testing.assert_allclose(np.asarray(out4.astype(jnp.float32)), ref4,
                               rtol=5e-2, atol=5e-2)

    print("KERNEL_OK")
</pallas_src>

<mosaic_0001>
module attributes {stable_mosaic.version = 11 : i64} {
  func.func @kernel(%arg0: i32, %arg1: i32, %arg2: memref<8x128xf32, #tpu.memory_space<vmem>>, %arg3: memref<8x128xf32, #tpu.memory_space<vmem>>, %arg4: memref<8x128xf32, #tpu.memory_space<vmem>>) attributes {dimension_semantics = [#tpu.dimension_semantics<parallel>, #tpu.dimension_semantics<parallel>], iteration_bounds = array<i64: 1, 1>, scalar_prefetch = 0 : i64, scratch_operands = 0 : i64, tpu.core_type = #tpu.core_type<tc>, window_params = [{transform_indices = @transform_0, window_bounds = array<i64: 8, 128>}, {transform_indices = @transform_1, window_bounds = array<i64: 8, 128>}, {transform_indices = @transform_2, window_bounds = array<i64: 8, 128>}]} {
    %c0_i32 = arith.constant 0 : i32
    %0 = arith.cmpi sgt, %arg1, %c0_i32 : i32
    %1 = arith.extui %0 : i1 to i32
    %2 = arith.sitofp %1 : i32 to f32
    %c0 = arith.constant 0 : index
    %c0_0 = arith.constant 0 : index
    %3 = vector.load %arg2[%c0, %c0_0] : memref<8x128xf32, #tpu.memory_space<vmem>>, vector<8x128xf32>
    %4 = vector.broadcast %2 : f32 to vector<8x128xf32>
    %5 = arith.mulf %3, %4 : vector<8x128xf32>
    %c0_1 = arith.constant 0 : index
    %c0_2 = arith.constant 0 : index
    %6 = vector.load %arg3[%c0_1, %c0_2] : memref<8x128xf32, #tpu.memory_space<vmem>>, vector<8x128xf32>
    %7 = tpu.concatenate %5, %6 in 1 : vector<8x128xf32>, vector<8x128xf32> -> vector<8x256xf32>
    %cst = arith.constant 1.000000e+00 : f32
    %8 = vector.broadcast %cst : f32 to vector<8x128xf32>
    %9 = arith.mulf %8, %6 : vector<8x128xf32>
    %10 = vector.extract_strided_slice %7 {offsets = [0, 127], sizes = [8, 128], strides = [1, 1]} : vector<8x256xf32> to vector<8x128xf32>
    %cst_3 = arith.constant -5.000000e-01 : f32
    %11 = vector.broadcast %cst_3 : f32 to vector<8x128xf32>
    %12 = arith.mulf %11, %10 : vector<8x128xf32>
    %13 = arith.addf %9, %12 : vector<8x128xf32>
    %14 = vector.extract_strided_slice %7 {offsets = [0, 126], sizes = [8, 128], strides = [1, 1]} : vector<8x256xf32> to vector<8x128xf32>
    %cst_4 = arith.constant -1.250000e-01 : f32
    %15 = vector.broadcast %cst_4 : f32 to vector<8x128xf32>
    %16 = arith.mulf %15, %14 : vector<8x128xf32>
    %17 = arith.addf %13, %16 : vector<8x128xf32>
    %18 = vector.extract_strided_slice %7 {offsets = [0, 125], sizes = [8, 128], strides = [1, 1]} : vector<8x256xf32> to vector<8x128xf32>
    %cst_5 = arith.constant -6.250000e-02 : f32
    %19 = vector.broadcast %cst_5 : f32 to vector<8x128xf32>
    %20 = arith.mulf %19, %18 : vector<8x128xf32>
    %21 = arith.addf %17, %20 : vector<8x128xf32>
    %22 = vector.extract_strided_slice %7 {offsets = [0, 124], sizes = [8, 128], strides = [1, 1]} : vector<8x256xf32> to vector<8x128xf32>
    %cst_6 = arith.constant -3.906250e-02 : f32
    %23 = vector.broadcast %cst_6 : f32 to vector<8x128xf32>
    %24 = arith.mulf %23, %22 : vector<8x128xf32>
    %25 = arith.addf %21, %24 : vector<8x128xf32>
    %26 = vector.extract_strided_slice %7 {offsets = [0, 123], sizes = [8, 128], strides = [1, 1]} : vector<8x256xf32> to vector<8x128xf32>
    %cst_7 = arith.constant -0.02734375 : f32
    %27 = vector.broadcast %cst_7 : f32 to vector<8x128xf32>
    %28 = arith.mulf %27, %26 : vector<8x128xf32>
    %29 = arith.addf %25, %28 : vector<8x128xf32>
    %30 = vector.extract_strided_slice %7 {offsets = [0, 122], sizes = [8, 128], strides = [1, 1]} : vector<8x256xf32> to vector<8x128xf32>
    %cst_8 = arith.constant -0.0205078125 : f32
    %31 = vector.broadcast %cst_8 : f32 to vector<8x128xf32>
    %32 = arith.mulf %31, %30 : vector<8x128xf32>
    %33 = arith.addf %29, %32 : vector<8x128xf32>
    %34 = vector.extract_strided_slice %7 {offsets = [0, 121], sizes = [8, 128], strides = [1, 1]} : vector<8x256xf32> to vector<8x128xf32>
    %cst_9 = arith.constant -0.0161132813 : f32
    %35 = vector.broadcast %cst_9 : f32 to vector<8x128xf32>
    %36 = arith.mulf %35, %34 : vector<8x128xf32>
    %37 = arith.addf %33, %36 : vector<8x128xf32>
    %38 = vector.extract_strided_slice %7 {offsets = [0, 120], sizes = [8, 128], strides = [1, 1]} : vector<8x256xf32> to vector<8x128xf32>
    %cst_10 = arith.constant -0.013092041 : f32
    %39 = vector.broadcast %cst_10 : f32 to vector<8x128xf32>
    %40 = arith.mulf %39, %38 : vector<8x128xf32>
    %41 = arith.addf %37, %40 : vector<8x128xf32>
    %42 = vector.extract_strided_slice %7 {offsets = [0, 119], sizes = [8, 128], strides = [1, 1]} : vector<8x256xf32> to vector<8x128xf32>
    %cst_11 = arith.constant -0.0109100342 : f32
    %43 = vector.broadcast %cst_11 : f32 to vector<8x128xf32>
    %44 = arith.mulf %43, %42 : vector<8x128xf32>
    %45 = arith.addf %41, %44 : vector<8x128xf32>
    %c0_12 = arith.constant 0 : index
    %c0_13 = arith.constant 0 : index
    %46 = vector.load %arg4[%c0_12, %c0_13] : memref<8x128xf32, #tpu.memory_space<vmem>>, vector<8x128xf32>
    tpu.vector_store %arg4[%c0_12, %c0_13], %45 {strides = array<i32>} : memref<8x128xf32, #tpu.memory_space<vmem>>, vector<8x128xf32>,
    return
  }
  func.func @transform_0(%arg0: i32, %arg1: i32) -> (i32, i32) {
    %c1_i32 = arith.constant 1 : i32
    %0 = arith.muli %arg1, %c1_i32 : i32
    %c1_i32_0 = arith.constant 1 : i32
    %1 = arith.subi %0, %c1_i32_0 : i32
    %c0_i32 = arith.constant 0 : i32
    %2 = arith.maxsi %1, %c0_i32 : i32
    %c0_i32_1 = arith.constant 0 : i32
    return %arg0, %2 : i32, i32
  }
  func.func @transform_1(%arg0: i32, %arg1: i32) -> (i32, i32) {
    %c0_i32 = arith.constant 0 : i32
    return %arg0, %arg1 : i32, i32
  }
  func.func @transform_2(%arg0: i32, %arg1: i32) -> (i32, i32) {
    %c0_i32 = arith.constant 0 : i32
    return %arg0, %arg1 : i32, i32
  }
}

</mosaic_0001>

<llo_original>
// kernel: tpu_custom_call.1
$region0: #{tpu_custom_call.1}
  #allocation0 [shape = 'u32[]', space=smem, size = 0x4, offset = 0x4, fixed_abs, tag = 'smem constant byte address 0x4 - core index']
  #allocation1 [shape = 'u32[72,128]{1,0:T(1,128)}', space=vmem, size = 0x9000, scoped, tag = 'internal scratch']
  %s0 = inlined_call_operand.hbm [shape: f32[8,128], index: 0, kind: input, shape index: {}]
  %s1 = inlined_call_operand.hbm [shape: f32[8,128], index: 1, kind: input, shape index: {}]
  %s2 = inlined_call_operand.hbm [shape: f32[8,128], index: 2, kind: output, shape index: {}]
  %s3 = sld [smem:[#allocation0]]
  $region26: #{tpu_custom_call.1} parent=0
    _
  %s5 = ssub.s32 1, %s3
  %s6 = scalar_select 0, %s5, %s3
  $region1: #{tpu_custom_call.1} parent=0
    #allocation2 [shape = 'u8[4096]{0}', space=vmem, size = 0x1000, scoped, tag = 'input window, operand 0, single buffered']
    #allocation3 [shape = 's32[1]{0}', space=sflag, size = 0x4, scoped, tag = 'scoped memory for tpu_custom_call.1']
    #allocation4 [shape = 's32[1]{0}', space=sflag, size = 0x4, scoped, tag = 'scoped memory for tpu_custom_call.1']
    #allocation5 [shape = 'u8[4096]{0}', space=vmem, size = 0x1000, scoped, tag = 'input window, operand 1, single buffered']
    #allocation6 [shape = 's32[1]{0}', space=sflag, size = 0x4, scoped, tag = 'scoped memory for tpu_custom_call.1']
    #allocation7 [shape = 'u8[4096]{0}', space=vmem, size = 0x1000, scoped, tag = 'output window, operand 0, single buffered']
    %7 = vsyncpa [#allocation3], 0
    %8 = vsyncpa [#allocation6], 0
    %9 = vsyncpa [#allocation4], 0
    // Predicated region
    $region2: #{tpu_custom_call.1} parent=1 // pred_check
      _
    $region3: #{tpu_custom_call.1} parent=1 // pred_check_branch
      %11 = sbr.rel (0) target = $region5
    $region4: #{tpu_custom_call.1} parent=1 // pred_region
      %s12 = ssub.s32 0, 1
      %p13 = scmp.gt.s32.totalorder %s12, 0
      %s14 = scalar_select %p13, %s12, 0
      %16 = vsyncadd [#allocation3], 0
      %s17 = smul.addr %s14, 8
      %s18 = scalar_lea.hbm %s0, %s17
      %s20 = sshll.u32 %s18, 4
      %s21 = int_to_ptr.hbm [resolvable:$true] %s20
      %s22 = sshll.u32 [#allocation2], 4
      %s23 = int_to_ptr.vmem [resolvable:$true] %s22
      %25 = dma.hbm_to_vmem [thread:$0]  %s21, 128, %s23, [#allocation3]
    $region5: #{tpu_custom_call.1} parent=1 // pred_fallthru
      _
    // Predicated region
    $region6: #{tpu_custom_call.1} parent=1 // pred_check
      _
    $region7: #{tpu_custom_call.1} parent=1 // pred_check_branch
      %27 = sbr.rel (0) target = $region9
    $region8: #{tpu_custom_call.1} parent=1 // pred_region
      %29 = vsyncadd [#allocation6], 0
      %s31 = sshll.u32 %s1, 4
      %s32 = int_to_ptr.hbm [resolvable:$true] %s31
      %s33 = sshll.u32 [#allocation5], 4
      %s34 = int_to_ptr.vmem [resolvable:$true] %s33
      %36 = dma.hbm_to_vmem [thread:$0]  %s32, 128, %s34, [#allocation6]
    $region9: #{tpu_custom_call.1} parent=1 // pred_fallthru
      _
    // Predicated region
    $region10: #{tpu_custom_call.1} parent=1 // pred_check
      _
    $region11: #{tpu_custom_call.1} parent=1 // pred_check_branch
      %38 = sbr.rel (0) target = $region13
    $region12: #{tpu_custom_call.1} parent=1 // pred_region
      %40 = dma.done [#allocation3], 128
    $region13: #{tpu_custom_call.1} parent=1 // pred_fallthru
      _
    // Predicated region
    $region14: #{tpu_custom_call.1} parent=1 // pred_check
      _
    $region15: #{tpu_custom_call.1} parent=1 // pred_check_branch
      %42 = sbr.rel (0) target = $region17
    $region16: #{tpu_custom_call.1} parent=1 // pred_region
      %44 = dma.done [#allocation6], 128
    $region17: #{tpu_custom_call.1} parent=1 // pred_fallthru
      _
    %s45 = ssub.s32 0, 1
    %p46 = scmp.gt.s32.totalorder %s45, 0
    %s47 = scalar_select %p46, %s45, 0
    %p48 = scmp.gt.s32.totalorder 0, 0
    %s49 = scalar_select %p48, 1, 0
    %s50 = scvt.s32.f32 %s49
    %v51 = vld [vmem:[#allocation2] sm:$0xff]
    %v52 = vstv %s50
    %v53 = vmul.f32 %v51, %v52
    %v54 = vld [vmem:[#allocation5] sm:$0xff]
    %v55 = vmul.f32 %v53, -0.5
    %v56 = vmul.f32 %v54, -0.5
    %59 = vrot.lane.b32.xlu0 %v55, 1
    %v60 = vpop.permute.xlu0 %59
    %61 = vrot.lane.b32.xlu0 %v56, 1
    %v62 = vpop.permute.xlu0 %61
    %vm63 = vcmask 7168
    %v64 = vsel %vm63, %v60, %v62
    %v66 = vadd.f32 %v54, %v64
    %v67 = vmul.f32 %v53, -0.125
    %v68 = vmul.f32 %v54, -0.125
    %71 = vrot.lane.b32.xlu0 %v67, 2
    %v72 = vpop.permute.xlu0 %71
    %73 = vrot.lane.b32.xlu0 %v68, 2
    %v74 = vpop.permute.xlu0 %73
    %vm75 = vcmask 15360
    %v76 = vsel %vm75, %v72, %v74
    %v78 = vadd.f32 %v66, %v76
    %v79 = vmul.f32 %v53, -0.0625
    %v80 = vmul.f32 %v54, -0.0625
    %83 = vrot.lane.b32.xlu0 %v79, 3
    %v84 = vpop.permute.xlu0 %83
    %85 = vrot.lane.b32.xlu0 %v80, 3
    %v86 = vpop.permute.xlu0 %85
    %vm87 = vcmask 23552
    %v88 = vsel %vm87, %v84, %v86
    %v90 = vadd.f32 %v78, %v88
    %v91 = vmul.f32 %v53, -0.0390625
    %v92 = vmul.f32 %v54, -0.0390625
    %95 = vrot.lane.b32.xlu0 %v91, 4
    %v96 = vpop.permute.xlu0 %95
    %97 = vrot.lane.b32.xlu0 %v92, 4
    %v98 = vpop.permute.xlu0 %97
    %vm99 = vcmask 31744
    %v100 = vsel %vm99, %v96, %v98
    %v102 = vadd.f32 %v90, %v100
    %v103 = vmul.f32 %v53, -0.02734375
    %v104 = vmul.f32 %v54, -0.02734375
    %107 = vrot.lane.b32.xlu0 %v103, 5
    %v108 = vpop.permute.xlu0 %107
    %109 = vrot.lane.b32.xlu0 %v104, 5
    %v110 = vpop.permute.xlu0 %109
    %vm111 = vcmask 39936
    %v112 = vsel %vm111, %v108, %v110
    %v114 = vadd.f32 %v102, %v112
    %v115 = vmul.f32 %v53, -0.020507813
    %v116 = vmul.f32 %v54, -0.020507813
    %119 = vrot.lane.b32.xlu0 %v115, 6
    %v120 = vpop.permute.xlu0 %119
    %121 = vrot.lane.b32.xlu0 %v116, 6
    %v122 = vpop.permute.xlu0 %121
    %vm123 = vcmask 48128
    %v124 = vsel %vm123, %v120, %v122
    %v126 = vadd.f32 %v114, %v124
    %v127 = vmul.f32 %v53, -0.016113281
    %v128 = vmul.f32 %v54, -0.016113281
    %131 = vrot.lane.b32.xlu0 %v127, 7
    %v132 = vpop.permute.xlu0 %131
    %133 = vrot.lane.b32.xlu0 %v128, 7
    %v134 = vpop.permute.xlu0 %133
    %vm135 = vcmask 56320
    %v136 = vsel %vm135, %v132, %v134
    %v138 = vadd.f32 %v126, %v136
    %v139 = vmul.f32 %v53, -0.013092041
    %v140 = vmul.f32 %v54, -0.013092041
    %143 = vrot.lane.b32.xlu0 %v139, 8
    %v144 = vpop.permute.xlu0 %143
    %145 = vrot.lane.b32.xlu0 %v140, 8
    %v146 = vpop.permute.xlu0 %145
    %vm147 = vcmask 64512
    %v148 = vsel %vm147, %v144, %v146
    %v150 = vadd.f32 %v138, %v148
    %v151 = vmul.f32 %v53, -0.010910034
    %v152 = vmul.f32 %v54, -0.010910034
    %155 = vrot.lane.b32.xlu0 %v151, 9
    %v156 = vpop.permute.xlu0 %155
    %157 = vrot.lane.b32.xlu0 %v152, 9
    %v158 = vpop.permute.xlu0 %157
    %vm159 = vcmask 72704
    %v160 = vsel %vm159, %v156, %v158
    %v162 = vadd.f32 %v150, %v160
    %163 = vst [vmem:[#allocation7] sm:$0xff] %v162
    // Predicated region
    $region18: #{tpu_custom_call.1} parent=1 // pred_check
      _
    $region19: #{tpu_custom_call.1} parent=1 // pred_check_branch
      %165 = sbr.rel (0) target = $region21
    $region20: #{tpu_custom_call.1} parent=1 // pred_region
      %167 = vsyncadd [#allocation4], 0
      %s169 = sshll.u32 [#allocation7], 4
      %s170 = int_to_ptr.vmem [resolvable:$true] %s169
      %s171 = sshll.u32 %s2, 4
      %s172 = int_to_ptr.hbm [resolvable:$true] %s171
      %174 = dma.vmem_to_hbm [thread:$0]  %s170, 128, %s172, [#allocation4]
    $region21: #{tpu_custom_call.1} parent=1 // pred_fallthru
      _
    // Predicated region
    $region22: #{tpu_custom_call.1} parent=1 // pred_check
      _
    $region23: #{tpu_custom_call.1} parent=1 // pred_check_branch
      %176 = sbr.rel (0) target = $region25
    $region24: #{tpu_custom_call.1} parent=1 // pred_region
      %178 = dma.done [#allocation4], 128
    $region25: #{tpu_custom_call.1} parent=1 // pred_fallthru
      _
    %179 = vsyncpa [#allocation3], 1
    %180 = vsyncpa [#allocation6], 1
    %181 = vsyncpa [#allocation4], 1

</llo_original>
